<compile_context>
chip_gen: v7x
topology: tpu7x:2x2x1
jax: 0.10.0
libtpu: 0.0.40
codegen_flags: <defaults>
</compile_context>

<pallas_src>
import functools
import math

import jax
import jax.numpy as jnp
from jax.experimental import pallas as pl
from jax.experimental.pallas import tpu as pltpu


# ----------------------------- tiled linear ---------------------------------

def _pick_tile(dim, candidates):
    for c in candidates:
        if c <= dim and dim % c == 0:
            return c
    return dim


def _linear_kernel(x_ref, w_ref, b_ref, o_ref, acc_ref):
    @pl.when(pl.program_id(2) == 0)
    def _init():
        acc_ref[...] = jnp.zeros_like(acc_ref)

    acc_ref[...] += jnp.dot(x_ref[...], w_ref[...],
                            preferred_element_type=jnp.float32)

    @pl.when(pl.program_id(2) == pl.num_programs(2) - 1)
    def _finalize():
        o_ref[...] = (acc_ref[...] + b_ref[...]).astype(o_ref.dtype)


def linear(x, w, b, *, out_dtype=None):
    """x: (M, K) bf16, w: (K, N) bf16, b: (1, N) f32 -> (M, N) out_dtype."""
    M, K = x.shape
    N = w.shape[1]
    out_dtype = out_dtype or x.dtype
    tm = _pick_tile(M, (256, 128, 64, 32, 16, 8))
    tn = _pick_tile(N, (512, 256, 128))
    tk = _pick_tile(K, (512, 256, 128))
    grid = (M // tm, N // tn, K // tk)
    return pl.pallas_call(
        _linear_kernel,
        out_shape=jax.ShapeDtypeStruct((M, N), out_dtype),
        grid=grid,
        in_specs=[
            pl.BlockSpec((tm, tk), lambda i, j, k: (i, k)),
            pl.BlockSpec((tk, tn), lambda i, j, k: (k, j)),
            pl.BlockSpec((1, tn), lambda i, j, k: (0, j)),
        ],
        out_specs=pl.BlockSpec((tm, tn), lambda i, j, k: (i, j)),
        scratch_shapes=[pltpu.VMEM((tm, tn), jnp.float32)],
        compiler_params=pltpu.CompilerParams(
            dimension_semantics=("parallel", "parallel", "arbitrary")),
    )(x, w, b)


# --------------------------- fused attention ---------------------------------

def _make_attn_kernel(gqa, head_dim, scale, has_mask):
    half = head_dim // 2

    def kernel(*refs):
        if has_mask:
            q_ref, k_ref, v_ref, cos_ref, sin_ref, mask_ref, o_ref = refs
        else:
            q_ref, k_ref, v_ref, cos_ref, sin_ref, o_ref = refs
            mask_ref = None

        cos = cos_ref[0]                       # (S, Hd) f32
        sin = sin_ref[0]                       # (S, Hd) f32, first half negated
        mask = mask_ref[0] if has_mask else None

        # RoPE on K once per kv head (shared by the gqa query heads).
        k = k_ref[0].astype(jnp.float32)       # (S, Hd)
        k_rot = (k * cos + pltpu.roll(k, half, axis=1) * sin).astype(jnp.bfloat16)
        v = v_ref[0]                           # (S, Hd) bf16

        q_all = q_ref[0]                       # (S, gqa*Hd) bf16
        o_parts = []
        for g in range(gqa):                   # static loop, gqa is small
            q = q_all[:, g * head_dim:(g + 1) * head_dim].astype(jnp.float32)
            q_rot = (q * cos + pltpu.roll(q, half, axis=1) * sin) * scale
            q_bf = q_rot.astype(jnp.bfloat16)
            # q @ k^T without materializing a transpose.
            s = jax.lax.dot_general(q_bf, k_rot, (((1,), (1,)), ((), ())),
                                    preferred_element_type=jnp.float32)
            if has_mask:
                s = s + mask
            s = s - jnp.max(s, axis=-1, keepdims=True)
            p = jnp.exp(s)
            p = p * pl.reciprocal(jnp.sum(p, axis=-1, keepdims=True), approx=True)
            o_parts.append(jnp.dot(p.astype(jnp.bfloat16), v,
                                   preferred_element_type=jnp.float32))
        # One lane-dense (S, gqa*Hd) store.
        o_ref[0] = jnp.concatenate(o_parts, axis=-1).astype(o_ref.dtype)

    return kernel


def attention(q, k, v, cos_full, sin_signed, mask, *, gqa, head_dim):
    """q: (B, S, H*Hd), k/v: (B, S, KvH*Hd), cos/sin: (B, S, Hd),
    mask: (B, S, S) additive f32 or None -> (B, S, H*Hd) bf16."""
    B, S, NQ = q.shape
    kvh = k.shape[-1] // head_dim
    scale = 1.0 / math.sqrt(head_dim)

    in_specs = [
        pl.BlockSpec((1, S, gqa * head_dim), lambda b, h: (b, 0, h)),   # Q group
        pl.BlockSpec((1, S, head_dim), lambda b, h: (b, 0, h)),         # K head
        pl.BlockSpec((1, S, head_dim), lambda b, h: (b, 0, h)),         # V head
        pl.BlockSpec((1, S, head_dim), lambda b, h: (b, 0, 0)),         # cos
        pl.BlockSpec((1, S, head_dim), lambda b, h: (b, 0, 0)),         # sin
    ]
    args = [q, k, v, cos_full, sin_signed]
    if mask is not None:
        in_specs.append(pl.BlockSpec((1, S, S), lambda b, h: (b, 0, 0)))
        args.append(mask)

    return pl.pallas_call(
        _make_attn_kernel(gqa, head_dim, scale, mask is not None),
        out_shape=jax.ShapeDtypeStruct((B, S, NQ), jnp.bfloat16),
        grid=(B, kvh),
        in_specs=in_specs,
        out_specs=pl.BlockSpec((1, S, gqa * head_dim), lambda b, h: (b, 0, h)),
        compiler_params=pltpu.CompilerParams(
            dimension_semantics=("parallel", "parallel")),
    )(*args)


# --------------------------- parameters --------------------------------------

def init_raw_params(key, cfg):
    """Parameters in the PyTorch module's layout (f32, interleaved RoPE)."""
    D = cfg["dim"]
    H, KvH = cfg["n_heads"], cfg["n_kv_heads"]
    Hd = D // H
    ks = jax.random.split(key, 4)

    def lin(k, fi, fo):
        kw, kb = jax.random.split(k)
        bound = 1.0 / math.sqrt(fi)
        w = jax.random.uniform(kw, (fi, fo), jnp.float32, -bound, bound)
        b = jax.random.uniform(kb, (1, fo), jnp.float32, -bound, bound)
        return w, b

    w_q, b_q = lin(ks[0], D, H * Hd)
    w_k, b_k = lin(ks[1], D, KvH * Hd)
    w_v, b_v = lin(ks[2], D, KvH * Hd)
    w_o, b_o = lin(ks[3], H * Hd, D)

    inv_freq = 1.0 / (cfg["rope_theta"] **
                      (jnp.arange(0, Hd, 2, dtype=jnp.float32) / Hd))
    pos = jnp.arange(cfg["max_position_embeddings"], dtype=jnp.float32)
    ang = jnp.outer(pos, inv_freq)                      # (max_pos, Hd//2)
    return dict(w_q=w_q, b_q=b_q, w_k=w_k, b_k=b_k, w_v=w_v, b_v=b_v,
                w_o=w_o, b_o=b_o, cos=jnp.cos(ang), sin=jnp.sin(ang))


def convert_params(raw, cfg):
    """Fuse QKV weights, permute Q/K columns to [even|odd] per head (so RoPE
    becomes a half-split rotate), and cast matmul weights to bf16."""
    D = cfg["dim"]
    H, KvH = cfg["n_heads"], cfg["n_kv_heads"]
    Hd = D // H
    perm = jnp.concatenate([jnp.arange(0, Hd, 2), jnp.arange(1, Hd, 2)])

    def permute_heads(w, b, n_heads):
        idx = (jnp.arange(n_heads)[:, None] * Hd + perm[None, :]).reshape(-1)
        return w[:, idx], b[:, idx]

    wq, bq = permute_heads(raw["w_q"], raw["b_q"], H)
    wk, bk = permute_heads(raw["w_k"], raw["b_k"], KvH)
    w_qkv = jnp.concatenate([wq, wk, raw["w_v"]], axis=1).astype(jnp.bfloat16)
    b_qkv = jnp.concatenate([bq, bk, raw["b_v"]], axis=1)          # f32
    return dict(w_qkv=w_qkv, b_qkv=b_qkv,
                w_o=raw["w_o"].astype(jnp.bfloat16), b_o=raw["b_o"],
                cos=raw["cos"], sin=raw["sin"])


# --------------------------- forward pass ------------------------------------

def mha_forward(params, cfg, x, position_ids, attention_mask=None):
    """x: (B, S, D) f32, position_ids: (B, S) int32,
    attention_mask: additive f32 (B, 1, S, S) / (B, S, S) or None."""
    B, S, D = x.shape
    H, KvH = cfg["n_heads"], cfg["n_kv_heads"]
    Hd = D // H
    gqa = H // KvH
    Nq, Nk = H * Hd, KvH * Hd

    xf = x.astype(jnp.bfloat16).reshape(B * S, D)
    qkv = linear(xf, params["w_qkv"], params["b_qkv"], out_dtype=jnp.bfloat16)
    q = qkv[:, :Nq].reshape(B, S, Nq)
    k = qkv[:, Nq:Nq + Nk].reshape(B, S, Nk)
    v = qkv[:, Nq + Nk:].reshape(B, S, Nk)

    # Half-split RoPE tables (sign folded into sin so the kernel is mul+FMA).
    cos = params["cos"][position_ids]                   # (B, S, Hd//2) f32
    sin = params["sin"][position_ids]
    cos_full = jnp.concatenate([cos, cos], axis=-1)     # (B, S, Hd)
    sin_signed = jnp.concatenate([-sin, sin], axis=-1)  # (B, S, Hd)

    mask = None
    if attention_mask is not None:
        # TODO(synk): per-head (B, H, S, S) masks not supported by the fused kernel.
        mask = attention_mask.reshape(B, S, S).astype(jnp.float32)

    attn = attention(q, k, v, cos_full, sin_signed, mask, gqa=gqa, head_dim=Hd)
    out = linear(attn.reshape(B * S, Nq), params["w_o"], params["b_o"],
                 out_dtype=jnp.float32)
    return out.reshape(B, S, D)


# ----------------------- pure-JAX reference (PyTorch semantics) --------------

def mha_reference(raw, cfg, x, position_ids, attention_mask=None):
    B, S, D = x.shape
    H, KvH = cfg["n_heads"], cfg["n_kv_heads"]
    Hd = D // H
    gqa = H // KvH
    bf = jnp.bfloat16
    xb = x.astype(bf).reshape(B * S, D)

    def proj(w, b, nh):
        y = jnp.dot(xb, w.astype(bf), preferred_element_type=jnp.float32) + b
        y = y.astype(bf).astype(jnp.float32)            # match kernel's bf16 output
        return y.reshape(B, S, nh, Hd).transpose(0, 2, 1, 3)

    q = proj(raw["w_q"], raw["b_q"], H)
    k = proj(raw["w_k"], raw["b_k"], KvH)
    v = proj(raw["w_v"], raw["b_v"], KvH)

    cos = raw["cos"][position_ids][:, None, :, :]       # (B, 1, S, Hd//2)
    sin = raw["sin"][position_ids][:, None, :, :]

    def rope(t):                                        # interleaved, like PyTorch
        te, to = t[..., 0::2], t[..., 1::2]
        re = te * cos - to * sin
        ro = te * sin + to * cos
        return jnp.stack((re, ro), axis=-1).reshape(t.shape)

    q, k = rope(q), rope(k)
    k = jnp.repeat(k, gqa, axis=1)
    v = jnp.repeat(v, gqa, axis=1)

    scale = 1.0 / math.sqrt(Hd)
    s = jnp.einsum("bhqd,bhkd->bhqk", (q * scale).astype(bf), k.astype(bf),
                   preferred_element_type=jnp.float32)
    if attention_mask is not None:
        s = s + attention_mask.reshape(B, 1, S, S)
    p = jax.nn.softmax(s, axis=-1)
    o = jnp.einsum("bhqk,bhkd->bhqd", p.astype(bf), v.astype(bf),
                   preferred_element_type=jnp.float32)
    o = o.transpose(0, 2, 1, 3).reshape(B * S, H * Hd)
    out = jnp.dot(o.astype(bf), raw["w_o"].astype(bf),
                  preferred_element_type=jnp.float32) + raw["b_o"]
    return out.reshape(B, S, D)


# ---------------------------------- main --------------------------------------

if __name__ == "__main__":
    cfg = dict(
        dim=256,
        n_heads=2,
        n_kv_heads=1,          # gqa_factor = 2, head_dim = 128 (lane-dense)
        rope_theta=10000.0,
        max_position_embeddings=32,
    )
    B, S = 2, 8

    key = jax.random.PRNGKey(0)
    k_params, k_x = jax.random.split(key)
    raw = init_raw_params(k_params, cfg)
    params = convert_params(raw, cfg)

    x = jax.random.normal(k_x, (B, S, cfg["dim"]), jnp.float32)
    position_ids = jnp.broadcast_to(jnp.arange(S, dtype=jnp.int32)[None, :], (B, S))

    # Additive causal mask (built directly with where, no float==float compares).
    causal = jnp.tril(jnp.ones((S, S), dtype=bool))
    attn_mask = jnp.where(causal, 0.0, -1e30).astype(jnp.float32)
    attn_mask = jnp.broadcast_to(attn_mask[None, None], (B, 1, S, S))

    out = mha_forward(params, cfg, x, position_ids, attn_mask)
    ref = mha_reference(raw, cfg, x, position_ids, attn_mask)
    out_nomask = mha_forward(params, cfg, x, position_ids, None)
    ref_nomask = mha_reference(raw, cfg, x, position_ids, None)
    jax.block_until_ready((out, ref, out_nomask, ref_nomask))

    assert out.shape == (B, S, cfg["dim"])
    assert out_nomask.shape == (B, S, cfg["dim"])
    err_m = float(jnp.max(jnp.abs(out - ref)))
    err_n = float(jnp.max(jnp.abs(out_nomask - ref_nomask)))
    assert err_m < 5e-2, f"masked-path mismatch: {err_m}"
    assert err_n < 5e-2, f"unmasked-path mismatch: {err_n}"
    print("KERNEL_OK")
</pallas_src>

<mosaic_0001>
module attributes {stable_mosaic.version = 11 : i64} {
  func.func @_linear_kernel(%arg0: i32, %arg1: i32, %arg2: i32, %arg3: memref<16x256xbf16, #tpu.memory_space<vmem>>, %arg4: memref<256x512xbf16, #tpu.memory_space<vmem>>, %arg5: memref<1x512xf32, #tpu.memory_space<vmem>>, %arg6: memref<16x512xbf16, #tpu.memory_space<vmem>>, %arg7: memref<16x512xf32, #tpu.memory_space<vmem>>) attributes {dimension_semantics = [#tpu.dimension_semantics<parallel>, #tpu.dimension_semantics<parallel>, #tpu.dimension_semantics<arbitrary>], iteration_bounds = array<i64: 1, 1, 1>, scalar_prefetch = 0 : i64, scratch_operands = 1 : i64, tpu.core_type = #tpu.core_type<tc>, window_params = [{transform_indices = @transform_0, window_bounds = array<i64: 16, 256>}, {transform_indices = @transform_1, window_bounds = array<i64: 256, 512>}, {transform_indices = @transform_2, window_bounds = array<i64: 1, 512>}, {transform_indices = @transform_3, window_bounds = array<i64: 16, 512>}]} {
    %c0_i32 = arith.constant 0 : i32
    %0 = arith.cmpi eq, %arg2, %c0_i32 : i32
    %1 = arith.extui %0 : i1 to i32
    %c0_i32_0 = arith.constant 0 : i32
    %2 = arith.cmpi ne, %1, %c0_i32_0 : i32
    scf.if %2 {
      %cst_10 = arith.constant 0.000000e+00 : f32
      %12 = vector.broadcast %cst_10 : f32 to vector<16x512xf32>
      %c0_11 = arith.constant 0 : index
      %c0_12 = arith.constant 0 : index
      %13 = vector.load %arg7[%c0_11, %c0_12] : memref<16x512xf32, #tpu.memory_space<vmem>>, vector<16x512xf32>
      tpu.vector_store %arg7[%c0_11, %c0_12], %12 {strides = array<i32>} : memref<16x512xf32, #tpu.memory_space<vmem>>, vector<16x512xf32>,
    } else {
    }
    %c0 = arith.constant 0 : index
    %c0_1 = arith.constant 0 : index
    %3 = vector.load %arg7[%c0, %c0_1] : memref<16x512xf32, #tpu.memory_space<vmem>>, vector<16x512xf32>
    %c0_2 = arith.constant 0 : index
    %c0_3 = arith.constant 0 : index
    %4 = vector.load %arg3[%c0_2, %c0_3] : memref<16x256xbf16, #tpu.memory_space<vmem>>, vector<16x256xbf16>
    %c0_4 = arith.constant 0 : index
    %c0_5 = arith.constant 0 : index
    %5 = vector.load %arg4[%c0_4, %c0_5] : memref<256x512xbf16, #tpu.memory_space<vmem>>, vector<256x512xbf16>
    %cst = arith.constant dense<0.000000e+00> : vector<16x512xf32>
    %6 = tpu.matmul %4, %5, %cst {dimension_numbers = #tpu.dot_dimension_numbers<[1], [0], [0], [1], [0, 0, 1, 1], [], []>} : vector<16x256xbf16>, vector<256x512xbf16>, vector<16x512xf32> -> vector<16x512xf32>
    %7 = arith.addf %3, %6 : vector<16x512xf32>
    %c0_6 = arith.constant 0 : index
    %c0_7 = arith.constant 0 : index
    %8 = vector.load %arg7[%c0_6, %c0_7] : memref<16x512xf32, #tpu.memory_space<vmem>>, vector<16x512xf32>
    tpu.vector_store %arg7[%c0_6, %c0_7], %7 {strides = array<i32>} : memref<16x512xf32, #tpu.memory_space<vmem>>, vector<16x512xf32>,
    %c0_i32_8 = arith.constant 0 : i32
    %9 = arith.cmpi eq, %arg2, %c0_i32_8 : i32
    %10 = arith.extui %9 : i1 to i32
    %c0_i32_9 = arith.constant 0 : i32
    %11 = arith.cmpi ne, %10, %c0_i32_9 : i32
    scf.if %11 {
      %c0_10 = arith.constant 0 : index
      %c0_11 = arith.constant 0 : index
      %12 = vector.load %arg7[%c0_10, %c0_11] : memref<16x512xf32, #tpu.memory_space<vmem>>, vector<16x512xf32>
      %c0_12 = arith.constant 0 : index
      %c0_13 = arith.constant 0 : index
      %13 = vector.load %arg5[%c0_12, %c0_13] : memref<1x512xf32, #tpu.memory_space<vmem>>, vector<1x512xf32>
      %14 = vector.broadcast %13 : vector<1x512xf32> to vector<16x512xf32>
      %15 = arith.addf %12, %14 : vector<16x512xf32>
      %16 = arith.truncf %15 : vector<16x512xf32> to vector<16x512xbf16>
      %c0_14 = arith.constant 0 : index
      %c0_15 = arith.constant 0 : index
      %17 = vector.load %arg6[%c0_14, %c0_15] : memref<16x512xbf16, #tpu.memory_space<vmem>>, vector<16x512xbf16>
      tpu.vector_store %arg6[%c0_14, %c0_15], %16 {strides = array<i32>} : memref<16x512xbf16, #tpu.memory_space<vmem>>, vector<16x512xbf16>,
    } else {
    }
    return
  }
  func.func @transform_0(%arg0: i32, %arg1: i32, %arg2: i32) -> (i32, i32) {
    %c0_i32 = arith.constant 0 : i32
    return %arg0, %arg2 : i32, i32
  }
  func.func @transform_1(%arg0: i32, %arg1: i32, %arg2: i32) -> (i32, i32) {
    %c0_i32 = arith.constant 0 : i32
    return %arg2, %arg1 : i32, i32
  }
  func.func @transform_2(%arg0: i32, %arg1: i32, %arg2: i32) -> (i32, i32) {
    %c0_i32 = arith.constant 0 : i32
    %c0_i32_0 = arith.constant 0 : i32
    return %c0_i32, %arg1 : i32, i32
  }
  func.func @transform_3(%arg0: i32, %arg1: i32, %arg2: i32) -> (i32, i32) {
    %c0_i32 = arith.constant 0 : i32
    return %arg0, %arg1 : i32, i32
  }
}

</mosaic_0001>

<llo_original>
// kernel: tpu_custom_call.1
$region0: #{tpu_custom_call.1}
  #allocation0 [shape = 'u32[]', space=smem, size = 0x4, offset = 0x4, fixed_abs, tag = 'smem constant byte address 0x4 - core index']
  #allocation1 [shape = 'u32[144,128]{1,0:T(1,128)}', space=vmem, size = 0x12000, scoped, tag = 'internal scratch']
  #allocation2 [shape = 'f32[16,512]{1,0:T(8,128)}', space=vmem, size = 0x8000, scoped, tag = 'scratch operand']
  %s0 = inlined_call_operand.hbm [shape: bf16[16,256], index: 0, kind: input, shape index: {}]
  %s1 = inlined_call_operand.hbm [shape: bf16[256,512], index: 1, kind: input, shape index: {}]
  %s2 = inlined_call_operand.vmem [shape: f32[1,512], index: 2, kind: input, shape index: {}]
  %s3 = inlined_call_operand.hbm [shape: bf16[16,512], index: 3, kind: output, shape index: {}]
  %s4 = sld [smem:[#allocation0]]
  $region38: #{tpu_custom_call.1} parent=0
    _
  %s6 = ssub.s32 1, %s4
  %s7 = scalar_select 0, %s6, %s4
  $region1: #{tpu_custom_call.1} parent=0
    #allocation3 [shape = 'u8[8192]{0}', space=vmem, size = 0x2000, scoped, tag = 'input window, operand 0, single buffered']
    #allocation4 [shape = 's32[1]{0}', space=sflag, size = 0x4, scoped, tag = 'scoped memory for tpu_custom_call.1']
    #allocation5 [shape = 's32[1]{0}', space=sflag, size = 0x4, scoped, tag = 'scoped memory for tpu_custom_call.1']
    #allocation6 [shape = 'u8[262144]{0}', space=vmem, size = 0x40000, scoped, tag = 'input window, operand 1, single buffered']
    #allocation7 [shape = 's32[1]{0}', space=sflag, size = 0x4, scoped, tag = 'scoped memory for tpu_custom_call.1']
    #allocation8 [shape = 'u8[16384]{0}', space=vmem, size = 0x4000, scoped, tag = 'output window, operand 0, single buffered']
    %8 = vsyncpa [#allocation4], 0
    %9 = vsyncpa [#allocation7], 0
    %10 = vsyncpa [#allocation5], 0
    // Predicated region
    $region2: #{tpu_custom_call.1} parent=1 // pred_check
      _
    $region3: #{tpu_custom_call.1} parent=1 // pred_check_branch
      %12 = sbr.rel (0) target = $region5
    $region4: #{tpu_custom_call.1} parent=1 // pred_region
      %s14 = ssub.s32 256, 256
      %15 = vsyncadd [#allocation4], %s14
      %s16 = sshll.u32 [#allocation3], 4
      %s17 = int_to_ptr.vmem [resolvable:$true] %s16
      %22 = dma.hbm_to_vmem [thread:$0]  %s0, 256, %s17, [#allocation4], 128, 128, 8
    $region5: #{tpu_custom_call.1} parent=1 // pred_fallthru
      _
    // Predicated region
    $region6: #{tpu_custom_call.1} parent=1 // pred_check
      _
    $region7: #{tpu_custom_call.1} parent=1 // pred_check_branch
      %24 = sbr.rel (0) target = $region9
    $region8: #{tpu_custom_call.1} parent=1 // pred_region
      %s26 = ssub.s32 8192, 8192
      %27 = vsyncadd [#allocation7], %s26
      %s28 = sshll.u32 [#allocation6], 4
      %s29 = int_to_ptr.vmem [resolvable:$true] %s28
      %34 = dma.hbm_to_vmem [thread:$0]  %s1, 8192, %s29, [#allocation7], 256, 256, 16
    $region9: #{tpu_custom_call.1} parent=1 // pred_fallthru
      _
    // Predicated region
    $region10: #{tpu_custom_call.1} parent=1 // pred_check
      _
    $region11: #{tpu_custom_call.1} parent=1 // pred_check_branch
      %36 = sbr.rel (0) target = $region13
    $region12: #{tpu_custom_call.1} parent=1 // pred_region
      _
    $region13: #{tpu_custom_call.1} parent=1 // pred_fallthru
      _
    // Predicated region
    $region14: #{tpu_custom_call.1} parent=1 // pred_check
      _
    $region15: #{tpu_custom_call.1} parent=1 // pred_check_branch
      %38 = sbr.rel (0) target = $region17
    $region16: #{tpu_custom_call.1} parent=1 // pred_region
      %39 = dma.done [#allocation4], 256
    $region17: #{tpu_custom_call.1} parent=1 // pred_fallthru
      _
    // Predicated region
    $region18: #{tpu_custom_call.1} parent=1 // pred_check
      _
    $region19: #{tpu_custom_call.1} parent=1 // pred_check_branch
      %41 = sbr.rel (0) target = $region21
    $region20: #{tpu_custom_call.1} parent=1 // pred_region
      %42 = dma.done [#allocation7], 8192
    $region21: #{tpu_custom_call.1} parent=1 // pred_fallthru
      _
    %p43 = scmp.eq.s32.totalorder 0, 0
    // Predicated region
    $region22: #{tpu_custom_call.1} parent=1 // pred_check
      %p44 = pneg %p43
    $region23: #{tpu_custom_call.1} parent=1 // pred_check_branch
      %46 = sbr.rel (%p44) target = $region25
    $region24: #{tpu_custom_call.1} parent=1 // pred_region
      %47 = vst [vmem:[#allocation2] sm:$0xff] 0.0
      %48 = vst [vmem:[#allocation2 + $0x8] sm:$0xff] 0.0
      %49 = vst [vmem:[#allocation2 + $0x10] sm:$0xff] 0.0
      %50 = vst [vmem:[#allocation2 + $0x18] sm:$0xff] 0.0
      %51 = vst [vmem:[#allocation2 + $0x20] sm:$0xff] 0.0
      %52 = vst [vmem:[#allocation2 + $0x28] sm:$0xff] 0.0
      %53 = vst [vmem:[#allocation2 + $0x30] sm:$0xff] 0.0
      %54 = vst [vmem:[#allocation2 + $0x38] sm:$0xff] 0.0
    $region25: #{tpu_custom_call.1} parent=1 // pred_fallthru
      _
    %v55 = vld [vmem:[#allocation2] sm:$0xff]
    %v56 = vld [vmem:[#allocation2 + $0x8] sm:$0xff]
    %v57 = vld [vmem:[#allocation2 + $0x10] sm:$0xff]
    %v58 = vld [vmem:[#allocation2 + $0x18] sm:$0xff]
    %v59 = vld [vmem:[#allocation2 + $0x20] sm:$0xff]
    %v60 = vld [vmem:[#allocation2 + $0x28] sm:$0xff]
    %v61 = vld [vmem:[#allocation2 + $0x30] sm:$0xff]
    %v62 = vld [vmem:[#allocation2 + $0x38] sm:$0xff]
    %v63 = vld [vmem:[#allocation3] sm:$0xff]
    %v64 = vld [vmem:[#allocation3 + $0x8] sm:$0xff]
    %v65 = vld [vmem:[#allocation6] sm:$0xff]
    %v66 = vld [vmem:[#allocation6 + $0x8] sm:$0xff]
    %v67 = vld [vmem:[#allocation6 + $0x10] sm:$0xff]
    %v68 = vld [vmem:[#allocation6 + $0x18] sm:$0xff]
    %v69 = vld [vmem:[#allocation6 + $0x20] sm:$0xff]
    %v70 = vld [vmem:[#allocation6 + $0x28] sm:$0xff]
    %v71 = vld [vmem:[#allocation6 + $0x30] sm:$0xff]
    %v72 = vld [vmem:[#allocation6 + $0x38] sm:$0xff]
    %v73 = vld [vmem:[#allocation6 + $0x40] sm:$0xff]
    %v74 = vld [vmem:[#allocation6 + $0x48] sm:$0xff]
    %v75 = vld [vmem:[#allocation6 + $0x50] sm:$0xff]
    %v76 = vld [vmem:[#allocation6 + $0x58] sm:$0xff]
    %v77 = vld [vmem:[#allocation6 + $0x60] sm:$0xff]
    %v78 = vld [vmem:[#allocation6 + $0x68] sm:$0xff]
    %v79 = vld [vmem:[#allocation6 + $0x70] sm:$0xff]
    %v80 = vld [vmem:[#allocation6 + $0x78] sm:$0xff]
    %v81 = vld [vmem:[#allocation6 + $0x80] sm:$0xff]
    %v82 = vld [vmem:[#allocation6 + $0x88] sm:$0xff]
    %v83 = vld [vmem:[#allocation6 + $0x90] sm:$0xff]
    %v84 = vld [vmem:[#allocation6 + $0x98] sm:$0xff]
    %v85 = vld [vmem:[#allocation6 + $0xa0] sm:$0xff]
    %v86 = vld [vmem:[#allocation6 + $0xa8] sm:$0xff]
    %v87 = vld [vmem:[#allocation6 + $0xb0] sm:$0xff]
    %v88 = vld [vmem:[#allocation6 + $0xb8] sm:$0xff]
    %v89 = vld [vmem:[#allocation6 + $0xc0] sm:$0xff]
    %v90 = vld [vmem:[#allocation6 + $0xc8] sm:$0xff]
    %v91 = vld [vmem:[#allocation6 + $0xd0] sm:$0xff]
    %v92 = vld [vmem:[#allocation6 + $0xd8] sm:$0xff]
    %v93 = vld [vmem:[#allocation6 + $0xe0] sm:$0xff]
    %v94 = vld [vmem:[#allocation6 + $0xe8] sm:$0xff]
    %v95 = vld [vmem:[#allocation6 + $0xf0] sm:$0xff]
    %v96 = vld [vmem:[#allocation6 + $0xf8] sm:$0xff]
    %v97 = vld [vmem:[#allocation6 + $0x100] sm:$0xff]
    %v98 = vld [vmem:[#allocation6 + $0x108] sm:$0xff]
    %v99 = vld [vmem:[#allocation6 + $0x110] sm:$0xff]
    %v100 = vld [vmem:[#allocation6 + $0x118] sm:$0xff]
    %v101 = vld [vmem:[#allocation6 + $0x120] sm:$0xff]
    %v102 = vld [vmem:[#allocation6 + $0x128] sm:$0xff]
    %v103 = vld [vmem:[#allocation6 + $0x130] sm:$0xff]
    %v104 = vld [vmem:[#allocation6 + $0x138] sm:$0xff]
    %v105 = vld [vmem:[#allocation6 + $0x140] sm:$0xff]
    %v106 = vld [vmem:[#allocation6 + $0x148] sm:$0xff]
    %v107 = vld [vmem:[#allocation6 + $0x150] sm:$0xff]
    %v108 = vld [vmem:[#allocation6 + $0x158] sm:$0xff]
    %v109 = vld [vmem:[#allocation6 + $0x160] sm:$0xff]
    %v110 = vld [vmem:[#allocation6 + $0x168] sm:$0xff]
    %v111 = vld [vmem:[#allocation6 + $0x170] sm:$0xff]
    %v112 = vld [vmem:[#allocation6 + $0x178] sm:$0xff]
    %v113 = vld [vmem:[#allocation6 + $0x180] sm:$0xff]
    %v114 = vld [vmem:[#allocation6 + $0x188] sm:$0xff]
    %v115 = vld [vmem:[#allocation6 + $0x190] sm:$0xff]
    %v116 = vld [vmem:[#allocation6 + $0x198] sm:$0xff]
    %v117 = vld [vmem:[#allocation6 + $0x1a0] sm:$0xff]
    %v118 = vld [vmem:[#allocation6 + $0x1a8] sm:$0xff]
    %v119 = vld [vmem:[#allocation6 + $0x1b0] sm:$0xff]
    %v120 = vld [vmem:[#allocation6 + $0x1b8] sm:$0xff]
    %v121 = vld [vmem:[#allocation6 + $0x1c0] sm:$0xff]
    %v122 = vld [vmem:[#allocation6 + $0x1c8] sm:$0xff]
    %v123 = vld [vmem:[#allocation6 + $0x1d0] sm:$0xff]
    %v124 = vld [vmem:[#allocation6 + $0x1d8] sm:$0xff]
    %v125 = vld [vmem:[#allocation6 + $0x1e0] sm:$0xff]
    %v126 = vld [vmem:[#allocation6 + $0x1e8] sm:$0xff]
    %v127 = vld [vmem:[#allocation6 + $0x1f0] sm:$0xff]
    %v128 = vld [vmem:[#allocation6 + $0x1f8] sm:$0xff]
    %v131 = vunpack.c.l.b16 %v63
    %v132 = vunpack.c.h.b16 %v63
    %v133 = vunpack.c.l.b16 %v64
    %v134 = vunpack.c.h.b16 %v64
    %v135 = vpack.c.b16 %v133, %v131
    %v136 = vpack.c.b16 %v134, %v132
    %v203 = vunpack.c.l.b16 %v65
    %v204 = vunpack.c.h.b16 %v65
    %v205 = vunpack.c.l.b16 %v66
    %v206 = vunpack.c.h.b16 %v66
    %v207 = vunpack.c.l.b16 %v67
    %v208 = vunpack.c.h.b16 %v67
    %v209 = vunpack.c.l.b16 %v68
    %v210 = vunpack.c.h.b16 %v68
    %v211 = vunpack.c.l.b16 %v69
    %v212 = vunpack.c.h.b16 %v69
    %v213 = vunpack.c.l.b16 %v70
    %v214 = vunpack.c.h.b16 %v70
    %v215 = vunpack.c.l.b16 %v71
    %v216 = vunpack.c.h.b16 %v71
    %v217 = vunpack.c.l.b16 %v72
    %v218 = vunpack.c.h.b16 %v72
    %v219 = vunpack.c.l.b16 %v73
    %v220 = vunpack.c.h.b16 %v73
    %v221 = vunpack.c.l.b16 %v74
    %v222 = vunpack.c.h.b16 %v74
    %v223 = vunpack.c.l.b16 %v75
    %v224 = vunpack.c.h.b16 %v75
    %v225 = vunpack.c.l.b16 %v76
    %v226 = vunpack.c.h.b16 %v76
    %v227 = vunpack.c.l.b16 %v77
    %v228 = vunpack.c.h.b16 %v77
    %v229 = vunpack.c.l.b16 %v78
    %v230 = vunpack.c.h.b16 %v78
    %v231 = vunpack.c.l.b16 %v79
    %v232 = vunpack.c.h.b16 %v79
    %v233 = vunpack.c.l.b16 %v80
    %v234 = vunpack.c.h.b16 %v80
    %v235 = vunpack.c.l.b16 %v81
    %v236 = vunpack.c.h.b16 %v81
    %v237 = vunpack.c.l.b16 %v82
    %v238 = vunpack.c.h.b16 %v82
    %v239 = vunpack.c.l.b16 %v83
    %v240 = vunpack.c.h.b16 %v83
    %v241 = vunpack.c.l.b16 %v84
    %v242 = vunpack.c.h.b16 %v84
    %v243 = vunpack.c.l.b16 %v85
    %v244 = vunpack.c.h.b16 %v85
    %v245 = vunpack.c.l.b16 %v86
    %v246 = vunpack.c.h.b16 %v86
    %v247 = vunpack.c.l.b16 %v87
    %v248 = vunpack.c.h.b16 %v87
    %v249 = vunpack.c.l.b16 %v88
    %v250 = vunpack.c.h.b16 %v88
    %v251 = vunpack.c.l.b16 %v89
    %v252 = vunpack.c.h.b16 %v89
    %v253 = vunpack.c.l.b16 %v90
    %v254 = vunpack.c.h.b16 %v90
    %v255 = vunpack.c.l.b16 %v91
    %v256 = vunpack.c.h.b16 %v91
    %v257 = vunpack.c.l.b16 %v92
    %v258 = vunpack.c.h.b16 %v92
    %v259 = vunpack.c.l.b16 %v93
    %v260 = vunpack.c.h.b16 %v93
    %v261 = vunpack.c.l.b16 %v94
    %v262 = vunpack.c.h.b16 %v94
    %v263 = vunpack.c.l.b16 %v95
    %v264 = vunpack.c.h.b16 %v95
    %v265 = vunpack.c.l.b16 %v96
    %v266 = vunpack.c.h.b16 %v96
    %v267 = vunpack.c.l.b16 %v97
    %v268 = vunpack.c.h.b16 %v97
    %v269 = vunpack.c.l.b16 %v98
    %v270 = vunpack.c.h.b16 %v98
    %v271 = vunpack.c.l.b16 %v99
    %v272 = vunpack.c.h.b16 %v99
    %v273 = vunpack.c.l.b16 %v100
    %v274 = vunpack.c.h.b16 %v100
    %v275 = vunpack.c.l.b16 %v101
    %v276 = vunpack.c.h.b16 %v101
    %v277 = vunpack.c.l.b16 %v102
    %v278 = vunpack.c.h.b16 %v102
    %v279 = vunpack.c.l.b16 %v103
    %v280 = vunpack.c.h.b16 %v103
    %v281 = vunpack.c.l.b16 %v104
    %v282 = vunpack.c.h.b16 %v104
    %v283 = vunpack.c.l.b16 %v105
    %v284 = vunpack.c.h.b16 %v105
    %v285 = vunpack.c.l.b16 %v106
    %v286 = vunpack.c.h.b16 %v106
    %v287 = vunpack.c.l.b16 %v107
    %v288 = vunpack.c.h.b16 %v107
    %v289 = vunpack.c.l.b16 %v108
    %v290 = vunpack.c.h.b16 %v108
    %v291 = vunpack.c.l.b16 %v109
    %v292 = vunpack.c.h.b16 %v109
    %v293 = vunpack.c.l.b16 %v110
    %v294 = vunpack.c.h.b16 %v110
    %v295 = vunpack.c.l.b16 %v111
    %v296 = vunpack.c.h.b16 %v111
    %v297 = vunpack.c.l.b16 %v112
    %v298 = vunpack.c.h.b16 %v112
    %v299 = vunpack.c.l.b16 %v113
    %v300 = vunpack.c.h.b16 %v113
    %v301 = vunpack.c.l.b16 %v114
    %v302 = vunpack.c.h.b16 %v114
    %v303 = vunpack.c.l.b16 %v115
    %v304 = vunpack.c.h.b16 %v115
    %v305 = vunpack.c.l.b16 %v116
    %v306 = vunpack.c.h.b16 %v116
    %v307 = vunpack.c.l.b16 %v117
    %v308 = vunpack.c.h.b16 %v117
    %v309 = vunpack.c.l.b16 %v118
    %v310 = vunpack.c.h.b16 %v118
    %v311 = vunpack.c.l.b16 %v119
    %v312 = vunpack.c.h.b16 %v119
    %v313 = vunpack.c.l.b16 %v120
    %v314 = vunpack.c.h.b16 %v120
    %v315 = vunpack.c.l.b16 %v121
    %v316 = vunpack.c.h.b16 %v121
    %v317 = vunpack.c.l.b16 %v122
    %v318 = vunpack.c.h.b16 %v122
    %v319 = vunpack.c.l.b16 %v123
    %v320 = vunpack.c.h.b16 %v123
    %v321 = vunpack.c.l.b16 %v124
    %v322 = vunpack.c.h.b16 %v124
    %v323 = vunpack.c.l.b16 %v125
    %v324 = vunpack.c.h.b16 %v125
    %v325 = vunpack.c.l.b16 %v126
    %v326 = vunpack.c.h.b16 %v126
    %v327 = vunpack.c.l.b16 %v127
    %v328 = vunpack.c.h.b16 %v127
    %v329 = vunpack.c.l.b16 %v128
    %v330 = vunpack.c.h.b16 %v128
    %v331 = vpack.c.b16 %v207, %v203
    %v332 = vpack.c.b16 %v208, %v204
    %v333 = vpack.c.b16 %v209, %v205
    %v334 = vpack.c.b16 %v210, %v206
    %v335 = vpack.c.b16 %v215, %v211
    %v336 = vpack.c.b16 %v216, %v212
    %v337 = vpack.c.b16 %v217, %v213
    %v338 = vpack.c.b16 %v218, %v214
    %v339 = vpack.c.b16 %v223, %v219
    %v340 = vpack.c.b16 %v224, %v220
    %v341 = vpack.c.b16 %v225, %v221
    %v342 = vpack.c.b16 %v226, %v222
    %v343 = vpack.c.b16 %v231, %v227
    %v344 = vpack.c.b16 %v232, %v228
    %v345 = vpack.c.b16 %v233, %v229
    %v346 = vpack.c.b16 %v234, %v230
    %v347 = vpack.c.b16 %v239, %v235
    %v348 = vpack.c.b16 %v240, %v236
    %v349 = vpack.c.b16 %v241, %v237
    %v350 = vpack.c.b16 %v242, %v238
    %v351 = vpack.c.b16 %v247, %v243
    %v352 = vpack.c.b16 %v248, %v244
    %v353 = vpack.c.b16 %v249, %v245
    %v354 = vpack.c.b16 %v250, %v246
    %v355 = vpack.c.b16 %v255, %v251
    %v356 = vpack.c.b16 %v256, %v252
    %v357 = vpack.c.b16 %v257, %v253
    %v358 = vpack.c.b16 %v258, %v254
    %v359 = vpack.c.b16 %v263, %v259
    %v360 = vpack.c.b16 %v264, %v260
    %v361 = vpack.c.b16 %v265, %v261
    %v362 = vpack.c.b16 %v266, %v262
    %v363 = vpack.c.b16 %v271, %v267
    %v364 = vpack.c.b16 %v272, %v268
    %v365 = vpack.c.b16 %v273, %v269
    %v366 = vpack.c.b16 %v274, %v270
    %v367 = vpack.c.b16 %v279, %v275
    %v368 = vpack.c.b16 %v280, %v276
    %v369 = vpack.c.b16 %v281, %v277
    %v370 = vpack.c.b16 %v282, %v278
    %v371 = vpack.c.b16 %v287, %v283
    %v372 = vpack.c.b16 %v288, %v284
    %v373 = vpack.c.b16 %v289, %v285
    %v374 = vpack.c.b16 %v290, %v286
    %v375 = vpack.c.b16 %v295, %v291
    %v376 = vpack.c.b16 %v296, %v292
    %v377 = vpack.c.b16 %v297, %v293
    %v378 = vpack.c.b16 %v298, %v294
    %v379 = vpack.c.b16 %v303, %v299
    %v380 = vpack.c.b16 %v304, %v300
    %v381 = vpack.c.b16 %v305, %v301
    %v382 = vpack.c.b16 %v306, %v302
    %v383 = vpack.c.b16 %v311, %v307
    %v384 = vpack.c.b16 %v312, %v308
    %v385 = vpack.c.b16 %v313, %v309
    %v386 = vpack.c.b16 %v314, %v310
    %v387 = vpack.c.b16 %v319, %v315
    %v388 = vpack.c.b16 %v320, %v316
    %v389 = vpack.c.b16 %v321, %v317
    %v390 = vpack.c.b16 %v322, %v318
    %v391 = vpack.c.b16 %v327, %v323
    %v392 = vpack.c.b16 %v328, %v324
    %v393 = vpack.c.b16 %v329, %v325
    %v394 = vpack.c.b16 %v330, %v326
    %459 = vmatprep.subr.bf16.mxu0 %v332
    %460 = vmatpush1.bf16.msra.mxu0 %v331
    %461 = vmatprep.subr.bf16.mxu0 %v336
    %462 = vmatpush1.bf16.msra.mxu0 %v335
    %463 = vmatprep.subr.bf16.mxu0 %v340
    %464 = vmatpush1.bf16.msra.mxu0 %v339
    %465 = vmatprep.subr.bf16.mxu0 %v344
    %466 = vmatpush1.bf16.msra.mxu0 %v343
    %467 = vmatprep.subr.bf16.mxu0 %v348
    %468 = vmatpush1.bf16.msra.mxu0 %v347
    %469 = vmatprep.subr.bf16.mxu0 %v352
    %470 = vmatpush1.bf16.msra.mxu0 %v351
    %471 = vmatprep.subr.bf16.mxu0 %v356
    %472 = vmatpush1.bf16.msra.mxu0 %v355
    %473 = vmatprep.subr.bf16.mxu0 %v360
    %474 = vmatpush1.bf16.msra.mxu0 %v359
    %475 = vmatprep.subr.bf16.mxu0 %v364
    %476 = vmatpush1.bf16.msra.mxu0 %v363
    %477 = vmatprep.subr.bf16.mxu0 %v368
    %478 = vmatpush1.bf16.msra.mxu0 %v367
    %479 = vmatprep.subr.bf16.mxu0 %v372
    %480 = vmatpush1.bf16.msra.mxu0 %v371
    %481 = vmatprep.subr.bf16.mxu0 %v376
    %482 = vmatpush1.bf16.msra.mxu0 %v375
    %483 = vmatprep.subr.bf16.mxu0 %v380
    %484 = vmatpush1.bf16.msra.mxu0 %v379
    %485 = vmatprep.subr.bf16.mxu0 %v384
    %486 = vmatpush1.bf16.msra.mxu0 %v383
    %487 = vmatprep.subr.bf16.mxu0 %v388
    %488 = vmatpush1.bf16.msra.mxu0 %v387
    %489 = vmatprep.subr.bf16.mxu0 %v392
    %490 = vmatpush1.bf16.msra.mxu0 %v391
    %491 = vmatprep.mubr.bf16.mxu0 %v136
    %492 = vmatmul.mubr.bf16.gmra.mrb[0].mxu0 %v135
    %v493 = vpop.f32.mrb[0].mxu0
    %v494 = vadd.f32 0.0, %v493
    %v495 = vpop.f32.mrb[0].mxu0
    %v496 = vadd.f32 0.0, %v495
    %v497 = vpop.f32.mrb[0].mxu0
    %v498 = vadd.f32 0.0, %v497
    %v499 = vpop.f32.mrb[0].mxu0
    %v500 = vadd.f32 0.0, %v499
    %501 = vdwg.mxu0
    %502 = vmatprep.subr.bf16.mxu0 %v334
    %503 = vmatpush1.bf16.msra.mxu0 %v333
    %504 = vmatprep.subr.bf16.mxu0 %v338
    %505 = vmatpush1.bf16.msra.mxu0 %v337
    %506 = vmatprep.subr.bf16.mxu0 %v342
    %507 = vmatpush1.bf16.msra.mxu0 %v341
    %508 = vmatprep.subr.bf16.mxu0 %v346
    %509 = vmatpush1.bf16.msra.mxu0 %v345
    %510 = vmatprep.subr.bf16.mxu0 %v350
    %511 = vmatpush1.bf16.msra.mxu0 %v349
    %512 = vmatprep.subr.bf16.mxu0 %v354
    %513 = vmatpush1.bf16.msra.mxu0 %v353
    %514 = vmatprep.subr.bf16.mxu0 %v358
    %515 = vmatpush1.bf16.msra.mxu0 %v357
    %516 = vmatprep.subr.bf16.mxu0 %v362
    %517 = vmatpush1.bf16.msra.mxu0 %v361
    %518 = vmatprep.subr.bf16.mxu0 %v366
    %519 = vmatpush1.bf16.msra.mxu0 %v365
    %520 = vmatprep.subr.bf16.mxu0 %v370
    %521 = vmatpush1.bf16.msra.mxu0 %v369
    %522 = vmatprep.subr.bf16.mxu0 %v374
    %523 = vmatpush1.bf16.msra.mxu0 %v373
    %524 = vmatprep.subr.bf16.mxu0 %v378
    %525 = vmatpush1.bf16.msra.mxu0 %v377
    %526 = vmatprep.subr.bf16.mxu0 %v382
    %527 = vmatpush1.bf16.msra.mxu0 %v381
    %528 = vmatprep.subr.bf16.mxu0 %v386
    %529 = vmatpush1.bf16.msra.mxu0 %v385
    %530 = vmatprep.subr.bf16.mxu0 %v390
    %531 = vmatpush1.bf16.msra.mxu0 %v389
    %532 = vmatprep.subr.bf16.mxu0 %v394
    %533 = vmatpush1.bf16.msra.mxu0 %v393
    %534 = vmatprep.mubr.bf16.mxu0 %v136
    %535 = vmatmul.mubr.bf16.gmra.mrb[0].mxu0 %v135
    %v536 = vpop.f32.mrb[0].mxu0
    %v537 = vadd.f32 0.0, %v536
    %v538 = vpop.f32.mrb[0].mxu0
    %v539 = vadd.f32 0.0, %v538
    %v540 = vpop.f32.mrb[0].mxu0
    %v541 = vadd.f32 0.0, %v540
    %v542 = vpop.f32.mrb[0].mxu0
    %v543 = vadd.f32 0.0, %v542
    %544 = vdwg.mxu0
    %v545 = vadd.f32 %v55, %v494
    %v546 = vadd.f32 %v56, %v496
    %v547 = vadd.f32 %v57, %v537
    %v548 = vadd.f32 %v58, %v539
    %v549 = vadd.f32 %v59, %v498
    %v550 = vadd.f32 %v60, %v500
    %v551 = vadd.f32 %v61, %v541
    %v552 = vadd.f32 %v62, %v543
    %553 = vst [vmem:[#allocation2] sm:$0xff] %v545
    %554 = vst [vmem:[#allocation2 + $0x8] sm:$0xff] %v546
    %555 = vst [vmem:[#allocation2 + $0x10] sm:$0xff] %v547
    %556 = vst [vmem:[#allocation2 + $0x18] sm:$0xff] %v548
    %557 = vst [vmem:[#allocation2 + $0x20] sm:$0xff] %v549
    %558 = vst [vmem:[#allocation2 + $0x28] sm:$0xff] %v550
    %559 = vst [vmem:[#allocation2 + $0x30] sm:$0xff] %v551
    %560 = vst [vmem:[#allocation2 + $0x38] sm:$0xff] %v552
    // Predicated region
    $region26: #{tpu_custom_call.1} parent=1 // pred_check
      %p561 = pneg %p43
    $region27: #{tpu_custom_call.1} parent=1 // pred_check_branch
      %563 = sbr.rel (%p561) target = $region29
    $region28: #{tpu_custom_call.1} parent=1 // pred_region
      %v564 = vld [vmem:[#allocation2] sm:$0xff]
      %v565 = vld [vmem:[#allocation2 + $0x8] sm:$0xff]
      %v566 = vld [vmem:[#allocation2 + $0x10] sm:$0xff]
      %v567 = vld [vmem:[#allocation2 + $0x18] sm:$0xff]
      %v568 = vld [vmem:[#allocation2 + $0x20] sm:$0xff]
      %v569 = vld [vmem:[#allocation2 + $0x28] sm:$0xff]
      %v570 = vld [vmem:[#allocation2 + $0x30] sm:$0xff]
      %v571 = vld [vmem:[#allocation2 + $0x38] sm:$0xff]
      %v572 = vld [vmem:[%s2] sm:$0xf]
      %v574 = vlaneseq
      %v575 = vshrl.u32 %v574, 7
      %v576 = vsub.s32 0, %v575
      %v577 = vrot.slane %v572, %v576
      %v578 = vlaneseq
      %v579 = vshrl.u32 %v578, 7
      %v580 = vsub.s32 1, %v579
      %v581 = vrot.slane %v572, %v580
      %v582 = vlaneseq
      %v583 = vshrl.u32 %v582, 7
      %v584 = vsub.s32 2, %v583
      %v585 = vrot.slane %v572, %v584
      %v586 = vlaneseq
      %v587 = vshrl.u32 %v586, 7
      %v588 = vsub.s32 3, %v587
      %v589 = vrot.slane %v572, %v588
      %v594 = vadd.f32 %v564, %v577
      %v595 = vadd.f32 %v565, %v581
      %v596 = vadd.f32 %v566, %v585
      %v597 = vadd.f32 %v567, %v589
      %v598 = vadd.f32 %v568, %v577
      %v599 = vadd.f32 %v569, %v581
      %v600 = vadd.f32 %v570, %v585
      %v601 = vadd.f32 %v571, %v589
      %v602 = vpack.c.bf16 %v598, %v594
      %v603 = vpack.c.bf16 %v599, %v595
      %v604 = vpack.c.bf16 %v600, %v596
      %v605 = vpack.c.bf16 %v601, %v597
      %v610 = vunpack.c.l.b16 %v602
      %v611 = vunpack.c.l.b16 %v603
      %v612 = vunpack.c.l.b16 %v604
      %v613 = vunpack.c.l.b16 %v605
      %v614 = vunpack.c.h.b16 %v602
      %v615 = vunpack.c.h.b16 %v603
      %v616 = vunpack.c.h.b16 %v604
      %v617 = vunpack.c.h.b16 %v605
      %v618 = vpack.c.b16 %v611, %v610
      %v619 = vpack.c.b16 %v613, %v612
      %v620 = vpack.c.b16 %v615, %v614
      %v621 = vpack.c.b16 %v617, %v616
      %626 = vst [vmem:[#allocation8] sm:$0xff] %v618
      %627 = vst [vmem:[#allocation8 + $0x8] sm:$0xff] %v619
      %628 = vst [vmem:[#allocation8 + $0x10] sm:$0xff] %v620
      %629 = vst [vmem:[#allocation8 + $0x18] sm:$0xff] %v621
    $region29: #{tpu_custom_call.1} parent=1 // pred_fallthru
      _
    // Predicated region
    $region30: #{tpu_custom_call.1} parent=1 // pred_check
      _
    $region31: #{tpu_custom_call.1} parent=1 // pred_check_branch
      %631 = sbr.rel (0) target = $region33
    $region32: #{tpu_custom_call.1} parent=1 // pred_region
      %s633 = ssub.s32 512, 512
      %634 = vsyncadd [#allocation5], %s633
      %s635 = sshll.u32 [#allocation8], 4
      %s636 = int_to_ptr.vmem [resolvable:$true] %s635
      %641 = dma.vmem_to_hbm [thread:$0]  %s636, 512, %s3, [#allocation5], 256, 256, 16
    $region33: #{tpu_custom_call.1} parent=1 // pred_fallthru
      _
    // Predicated region
    $region34: #{tpu_custom_call.1} parent=1 // pred_check
      _
    $region35: #{tpu_custom_call.1} parent=1 // pred_check_branch
      %643 = sbr.rel (0) target = $region37
    $region36: #{tpu_custom_call.1} parent=1 // pred_region
      %644 = dma.done [#allocation5], 512
    $region37: #{tpu_custom_call.1} parent=1 // pred_fallthru
      _
    %645 = vsyncpa [#allocation4], 1
    %646 = vsyncpa [#allocation7], 1
    %647 = vsyncpa [#allocation5], 1

</llo_original>
